<compile_context>
chip_gen: v7x
topology: tpu7x:2x2x1
jax: 0.10.0
libtpu: 0.0.40
codegen_flags: <defaults>
</compile_context>

<pallas_src>
import jax
import jax.numpy as jnp
from jax.experimental import pallas as pl
from jax.experimental.pallas import tpu as pltpu

DATA_DIM = 1
DATA_NUM = 3          # batch size must equal data_num (PyTorch broadcast of pb)
CTX_DIM = 20
PB_DIM = 2
HIDDEN_DIM = 40

# ---- packed-parameter slab layout (rows x 128 lanes, f32) -------------------
#   rows 0..39              : W   = [Wcc | w2d]  in lanes 0..40
#   row  BIAS_ROW  (40)     : bias = [bcc | b2d] in lanes 0..40
#   row  W1D_ROW   (41)     : w1d (fc1_data.weight.T) in lanes 0..39
#   rows CONST_ROW..+2 (42..44): const = pb@w1pb + b1pb + b1d + b1c, lanes 0..39
BIAS_ROW = HIDDEN_DIM
W1D_ROW = HIDDEN_DIM + 1
CONST_ROW = HIDDEN_DIM + 2
SLAB_ROWS = 48            # pad to a multiple of 8 sublanes
SLAB_LANES = 128          # one lane tile


def rnnpb_kernel(data_ref,   # (B, T)            lane-dense input
                 slab_ref,   # (48, 128)         packed parameters (see layout)
                 out_ref):   # (B, T)            lane-dense output
    B, T = data_ref.shape
    H = HIDDEN_DIM

    # Loop-invariant loads, done once so the recurrent weight stays resident
    # across the unrolled time loop.
    W = slab_ref[0:H, 0:H + 1]                          # (40, 41) = [Wcc | w2d]
    bias = slab_ref[BIAS_ROW:BIAS_ROW + 1, 0:H + 1]     # (1, 41)  = [bcc | b2d]
    w1d = slab_ref[W1D_ROW:W1D_ROW + 1, 0:H]            # (1, 40)
    const = slab_ref[CONST_ROW:CONST_ROW + B, 0:H]      # (B, 40)
    data_all = data_ref[...]                            # (B, T) — loaded once

    # rec_t = ctx_t @ w1c ; ctx_0 == 0  =>  rec_0 == 0 (bcc NOT applied at t=0).
    rec = jnp.zeros((B, H), jnp.float32)

    # T is static and small -> full unroll gives the scheduler cross-iteration
    # visibility. Only h -> y -> rec is serialized; the data*w1d terms and the
    # per-step output-column stores hide under the recurrent chain.
    for t in range(T):
        # data_dim == 1  =>  x @ w1d is exactly the broadcast product x * w1d.
        h = jnp.maximum(data_all[:, t:t + 1] * w1d + const + rec, 0.0)   # (B, H)
        # One fused MXU round-trip per step: recurrent term and output column.
        y = jnp.dot(h, W, preferred_element_type=jnp.float32) + bias     # (B, H+1)
        rec = y[:, :H]                                   # = h @ Wcc + bcc
        out_ref[:, t:t + 1] = y[:, H:H + 1]              # = h @ w2d + b2d


def _pack_slab(p):
    """Compose the ctx-elimination weights and pack all params into one slab."""
    high = jax.lax.Precision.HIGHEST
    wcc = jnp.dot(p["w2c"], p["w1c"], precision=high)                 # (H, H)
    bcc = jnp.dot(p["b2c"], p["w1c"], precision=high)                 # (1, H)
    const = (jnp.dot(p["pb"], p["w1pb"], precision=high)
             + p["b1pb"] + p["b1d"] + p["b1c"])                        # (B, H)

    slab = jnp.zeros((SLAB_ROWS, SLAB_LANES), jnp.float32)
    slab = slab.at[0:HIDDEN_DIM, 0:HIDDEN_DIM].set(wcc)
    slab = slab.at[0:HIDDEN_DIM, HIDDEN_DIM:HIDDEN_DIM + 1].set(p["w2d"])
    slab = slab.at[BIAS_ROW, 0:HIDDEN_DIM].set(bcc[0])
    slab = slab.at[BIAS_ROW, HIDDEN_DIM].set(p["b2d"][0, 0])
    slab = slab.at[W1D_ROW, 0:HIDDEN_DIM].set(p["w1d"][0])
    slab = slab.at[CONST_ROW:CONST_ROW + DATA_NUM, 0:HIDDEN_DIM].set(const)
    return slab


def rnnpb_forward(data, params):
    """data: (B, T) float32 with B == DATA_NUM. Returns (B, T)."""
    B, T = data.shape
    assert B == DATA_NUM, "PyTorch broadcast of pb requires batch == data_num"

    slab = _pack_slab(params)
    vmem = pl.BlockSpec(memory_space=pltpu.MemorySpace.VMEM)
    return pl.pallas_call(
        rnnpb_kernel,
        out_shape=jax.ShapeDtypeStruct((B, T), jnp.float32),
        in_specs=[vmem, vmem],     # 2 prologue DMAs total (data + param slab)
        out_specs=vmem,
    )(data, slab)


def rnnpb_reference(data, p):
    """Pure-JAX reference (faithful, unfolded recurrence) at full f32 precision."""
    high = jax.lax.Precision.HIGHEST
    B, T = data.shape
    ctx = jnp.zeros((B, CTX_DIM), jnp.float32)
    pb_term = jnp.dot(p["pb"], p["w1pb"], precision=high) + p["b1pb"]
    outs = []
    for t in range(T):
        x = data[:, t:t + 1]
        h = (jnp.dot(x, p["w1d"], precision=high) + p["b1d"] + pb_term
             + jnp.dot(ctx, p["w1c"], precision=high) + p["b1c"])
        h = jnp.maximum(h, 0.0)
        out = jnp.dot(h, p["w2d"], precision=high) + p["b2d"]          # (B, 1)
        ctx = jnp.dot(h, p["w2c"], precision=high) + p["b2c"]
        outs.append(out)
    return jnp.concatenate(outs, axis=1)                               # (B, T)


if __name__ == "__main__":
    key = jax.random.PRNGKey(0)
    ks = jax.random.split(key, 12)
    T = 8

    def u(k, shape, scale):
        return jax.random.uniform(k, shape, jnp.float32, -scale, scale)

    # Deterministic synthetic parameters, stored pre-transposed for
    # right-multiplication (in_dim, out_dim). The ctx weights use a smaller
    # scale so the recurrence is stable (spectral radius of w2c@w1c < 1).
    params = dict(
        pb=u(ks[0], (DATA_NUM, PB_DIM), 0.5),
        w1d=u(ks[1], (DATA_DIM, HIDDEN_DIM), 0.5),
        b1d=u(ks[2], (1, HIDDEN_DIM), 0.5),
        w1pb=u(ks[3], (PB_DIM, HIDDEN_DIM), 0.5),
        b1pb=u(ks[4], (1, HIDDEN_DIM), 0.5),
        w1c=u(ks[5], (CTX_DIM, HIDDEN_DIM), 0.2),
        b1c=u(ks[6], (1, HIDDEN_DIM), 0.5),
        w2d=u(ks[7], (HIDDEN_DIM, DATA_DIM), 0.5),   # fc2_data.weight.T -> (H, 1)
        b2d=u(ks[8], (1, 1), 0.5),
        w2c=u(ks[9], (HIDDEN_DIM, CTX_DIM), 0.2),    # fc2_ctx.weight.T  -> (H, CTX)
        b2c=u(ks[10], (1, CTX_DIM), 0.5),
    )
    data = u(ks[11], (DATA_NUM, T), 1.0)

    fwd = jax.jit(rnnpb_forward)
    out = fwd(data, params)
    jax.block_until_ready(out)

    ref = rnnpb_reference(data, params)
    assert out.shape == (DATA_NUM, T)
    max_err = float(jnp.max(jnp.abs(out - ref)))
    assert jnp.allclose(out, ref, atol=1e-5, rtol=1e-5), (
        f"mismatch vs JAX reference (max abs err {max_err})")
    print("KERNEL_OK")
</pallas_src>

<mosaic_0001>
module attributes {stable_mosaic.version = 11 : i64} {
  func.func @rnnpb_kernel(%arg0: memref<3x8xf32, #tpu.memory_space<vmem>>, %arg1: memref<48x128xf32, #tpu.memory_space<vmem>>, %arg2: memref<3x8xf32, #tpu.memory_space<vmem>>) attributes {dimension_semantics = [], scalar_prefetch = 0 : i64, scratch_operands = 0 : i64, tpu.core_type = #tpu.core_type<tc>} {
    %c0 = arith.constant 0 : index
    %c0_0 = arith.constant 0 : index
    %0 = vector.load %arg1[%c0, %c0_0] : memref<48x128xf32, #tpu.memory_space<vmem>>, vector<40x41xf32>
    %c40 = arith.constant 40 : index
    %c0_1 = arith.constant 0 : index
    %1 = vector.load %arg1[%c40, %c0_1] : memref<48x128xf32, #tpu.memory_space<vmem>>, vector<1x41xf32>
    %c41 = arith.constant 41 : index
    %c0_2 = arith.constant 0 : index
    %2 = vector.load %arg1[%c41, %c0_2] : memref<48x128xf32, #tpu.memory_space<vmem>>, vector<1x40xf32>
    %c42 = arith.constant 42 : index
    %c0_3 = arith.constant 0 : index
    %3 = vector.load %arg1[%c42, %c0_3] : memref<48x128xf32, #tpu.memory_space<vmem>>, vector<3x40xf32>
    %c0_4 = arith.constant 0 : index
    %c0_5 = arith.constant 0 : index
    %4 = vector.load %arg0[%c0_4, %c0_5] : memref<3x8xf32, #tpu.memory_space<vmem>>, vector<3x8xf32>
    %cst = arith.constant 0.000000e+00 : f32
    %5 = vector.broadcast %cst : f32 to vector<3x40xf32>
    %6 = vector.extract_strided_slice %4 {offsets = [0, 0], sizes = [3, 1], strides = [1, 1]} : vector<3x8xf32> to vector<3x1xf32>
    %7 = vector.broadcast %6 : vector<3x1xf32> to vector<3x40xf32>
    %8 = vector.broadcast %2 : vector<1x40xf32> to vector<3x40xf32>
    %9 = arith.mulf %7, %8 : vector<3x40xf32>
    %10 = arith.addf %9, %3 : vector<3x40xf32>
    %11 = arith.addf %10, %5 : vector<3x40xf32>
    %cst_6 = arith.constant 0.000000e+00 : f32
    %12 = vector.broadcast %cst_6 : f32 to vector<3x40xf32>
    %13 = arith.maximumf %11, %12 : vector<3x40xf32>
    %cst_7 = arith.constant dense<0.000000e+00> : vector<3x41xf32>
    %14 = tpu.matmul %13, %0, %cst_7 {dimension_numbers = #tpu.dot_dimension_numbers<[1], [0], [0], [1], [0, 0, 1, 1], [], []>} : vector<3x40xf32>, vector<40x41xf32>, vector<3x41xf32> -> vector<3x41xf32>
    %15 = vector.broadcast %1 : vector<1x41xf32> to vector<3x41xf32>
    %16 = arith.addf %14, %15 : vector<3x41xf32>
    %17 = vector.extract_strided_slice %16 {offsets = [0, 0], sizes = [3, 40], strides = [1, 1]} : vector<3x41xf32> to vector<3x40xf32>
    %18 = vector.extract_strided_slice %16 {offsets = [0, 40], sizes = [3, 1], strides = [1, 1]} : vector<3x41xf32> to vector<3x1xf32>
    %c0_8 = arith.constant 0 : index
    %c0_9 = arith.constant 0 : index
    %19 = vector.load %arg2[%c0_8, %c0_9] : memref<3x8xf32, #tpu.memory_space<vmem>>, vector<3x1xf32>
    tpu.vector_store %arg2[%c0_8, %c0_9], %18 {strides = array<i32>} : memref<3x8xf32, #tpu.memory_space<vmem>>, vector<3x1xf32>,
    %20 = vector.extract_strided_slice %4 {offsets = [0, 1], sizes = [3, 1], strides = [1, 1]} : vector<3x8xf32> to vector<3x1xf32>
    %21 = vector.broadcast %20 : vector<3x1xf32> to vector<3x40xf32>
    %22 = vector.broadcast %2 : vector<1x40xf32> to vector<3x40xf32>
    %23 = arith.mulf %21, %22 : vector<3x40xf32>
    %24 = arith.addf %23, %3 : vector<3x40xf32>
    %25 = arith.addf %24, %17 : vector<3x40xf32>
    %cst_10 = arith.constant 0.000000e+00 : f32
    %26 = vector.broadcast %cst_10 : f32 to vector<3x40xf32>
    %27 = arith.maximumf %25, %26 : vector<3x40xf32>
    %cst_11 = arith.constant dense<0.000000e+00> : vector<3x41xf32>
    %28 = tpu.matmul %27, %0, %cst_11 {dimension_numbers = #tpu.dot_dimension_numbers<[1], [0], [0], [1], [0, 0, 1, 1], [], []>} : vector<3x40xf32>, vector<40x41xf32>, vector<3x41xf32> -> vector<3x41xf32>
    %29 = vector.broadcast %1 : vector<1x41xf32> to vector<3x41xf32>
    %30 = arith.addf %28, %29 : vector<3x41xf32>
    %31 = vector.extract_strided_slice %30 {offsets = [0, 0], sizes = [3, 40], strides = [1, 1]} : vector<3x41xf32> to vector<3x40xf32>
    %32 = vector.extract_strided_slice %30 {offsets = [0, 40], sizes = [3, 1], strides = [1, 1]} : vector<3x41xf32> to vector<3x1xf32>
    %c0_12 = arith.constant 0 : index
    %c1 = arith.constant 1 : index
    %33 = vector.load %arg2[%c0_12, %c1] : memref<3x8xf32, #tpu.memory_space<vmem>>, vector<3x1xf32>
    tpu.vector_store %arg2[%c0_12, %c1], %32 {strides = array<i32>} : memref<3x8xf32, #tpu.memory_space<vmem>>, vector<3x1xf32>,
    %34 = vector.extract_strided_slice %4 {offsets = [0, 2], sizes = [3, 1], strides = [1, 1]} : vector<3x8xf32> to vector<3x1xf32>
    %35 = vector.broadcast %34 : vector<3x1xf32> to vector<3x40xf32>
    %36 = vector.broadcast %2 : vector<1x40xf32> to vector<3x40xf32>
    %37 = arith.mulf %35, %36 : vector<3x40xf32>
    %38 = arith.addf %37, %3 : vector<3x40xf32>
    %39 = arith.addf %38, %31 : vector<3x40xf32>
    %cst_13 = arith.constant 0.000000e+00 : f32
    %40 = vector.broadcast %cst_13 : f32 to vector<3x40xf32>
    %41 = arith.maximumf %39, %40 : vector<3x40xf32>
    %cst_14 = arith.constant dense<0.000000e+00> : vector<3x41xf32>
    %42 = tpu.matmul %41, %0, %cst_14 {dimension_numbers = #tpu.dot_dimension_numbers<[1], [0], [0], [1], [0, 0, 1, 1], [], []>} : vector<3x40xf32>, vector<40x41xf32>, vector<3x41xf32> -> vector<3x41xf32>
    %43 = vector.broadcast %1 : vector<1x41xf32> to vector<3x41xf32>
    %44 = arith.addf %42, %43 : vector<3x41xf32>
    %45 = vector.extract_strided_slice %44 {offsets = [0, 0], sizes = [3, 40], strides = [1, 1]} : vector<3x41xf32> to vector<3x40xf32>
    %46 = vector.extract_strided_slice %44 {offsets = [0, 40], sizes = [3, 1], strides = [1, 1]} : vector<3x41xf32> to vector<3x1xf32>
    %c0_15 = arith.constant 0 : index
    %c2 = arith.constant 2 : index
    %47 = vector.load %arg2[%c0_15, %c2] : memref<3x8xf32, #tpu.memory_space<vmem>>, vector<3x1xf32>
    tpu.vector_store %arg2[%c0_15, %c2], %46 {strides = array<i32>} : memref<3x8xf32, #tpu.memory_space<vmem>>, vector<3x1xf32>,
    %48 = vector.extract_strided_slice %4 {offsets = [0, 3], sizes = [3, 1], strides = [1, 1]} : vector<3x8xf32> to vector<3x1xf32>
    %49 = vector.broadcast %48 : vector<3x1xf32> to vector<3x40xf32>
    %50 = vector.broadcast %2 : vector<1x40xf32> to vector<3x40xf32>
    %51 = arith.mulf %49, %50 : vector<3x40xf32>
    %52 = arith.addf %51, %3 : vector<3x40xf32>
    %53 = arith.addf %52, %45 : vector<3x40xf32>
    %cst_16 = arith.constant 0.000000e+00 : f32
    %54 = vector.broadcast %cst_16 : f32 to vector<3x40xf32>
    %55 = arith.maximumf %53, %54 : vector<3x40xf32>
    %cst_17 = arith.constant dense<0.000000e+00> : vector<3x41xf32>
    %56 = tpu.matmul %55, %0, %cst_17 {dimension_numbers = #tpu.dot_dimension_numbers<[1], [0], [0], [1], [0, 0, 1, 1], [], []>} : vector<3x40xf32>, vector<40x41xf32>, vector<3x41xf32> -> vector<3x41xf32>
    %57 = vector.broadcast %1 : vector<1x41xf32> to vector<3x41xf32>
    %58 = arith.addf %56, %57 : vector<3x41xf32>
    %59 = vector.extract_strided_slice %58 {offsets = [0, 0], sizes = [3, 40], strides = [1, 1]} : vector<3x41xf32> to vector<3x40xf32>
    %60 = vector.extract_strided_slice %58 {offsets = [0, 40], sizes = [3, 1], strides = [1, 1]} : vector<3x41xf32> to vector<3x1xf32>
    %c0_18 = arith.constant 0 : index
    %c3 = arith.constant 3 : index
    %61 = vector.load %arg2[%c0_18, %c3] : memref<3x8xf32, #tpu.memory_space<vmem>>, vector<3x1xf32>
    tpu.vector_store %arg2[%c0_18, %c3], %60 {strides = array<i32>} : memref<3x8xf32, #tpu.memory_space<vmem>>, vector<3x1xf32>,
    %62 = vector.extract_strided_slice %4 {offsets = [0, 4], sizes = [3, 1], strides = [1, 1]} : vector<3x8xf32> to vector<3x1xf32>
    %63 = vector.broadcast %62 : vector<3x1xf32> to vector<3x40xf32>
    %64 = vector.broadcast %2 : vector<1x40xf32> to vector<3x40xf32>
    %65 = arith.mulf %63, %64 : vector<3x40xf32>
    %66 = arith.addf %65, %3 : vector<3x40xf32>
    %67 = arith.addf %66, %59 : vector<3x40xf32>
    %cst_19 = arith.constant 0.000000e+00 : f32
    %68 = vector.broadcast %cst_19 : f32 to vector<3x40xf32>
    %69 = arith.maximumf %67, %68 : vector<3x40xf32>
    %cst_20 = arith.constant dense<0.000000e+00> : vector<3x41xf32>
    %70 = tpu.matmul %69, %0, %cst_20 {dimension_numbers = #tpu.dot_dimension_numbers<[1], [0], [0], [1], [0, 0, 1, 1], [], []>} : vector<3x40xf32>, vector<40x41xf32>, vector<3x41xf32> -> vector<3x41xf32>
    %71 = vector.broadcast %1 : vector<1x41xf32> to vector<3x41xf32>
    %72 = arith.addf %70, %71 : vector<3x41xf32>
    %73 = vector.extract_strided_slice %72 {offsets = [0, 0], sizes = [3, 40], strides = [1, 1]} : vector<3x41xf32> to vector<3x40xf32>
    %74 = vector.extract_strided_slice %72 {offsets = [0, 40], sizes = [3, 1], strides = [1, 1]} : vector<3x41xf32> to vector<3x1xf32>
    %c0_21 = arith.constant 0 : index
    %c4 = arith.constant 4 : index
    %75 = vector.load %arg2[%c0_21, %c4] : memref<3x8xf32, #tpu.memory_space<vmem>>, vector<3x1xf32>
    tpu.vector_store %arg2[%c0_21, %c4], %74 {strides = array<i32>} : memref<3x8xf32, #tpu.memory_space<vmem>>, vector<3x1xf32>,
    %76 = vector.extract_strided_slice %4 {offsets = [0, 5], sizes = [3, 1], strides = [1, 1]} : vector<3x8xf32> to vector<3x1xf32>
    %77 = vector.broadcast %76 : vector<3x1xf32> to vector<3x40xf32>
    %78 = vector.broadcast %2 : vector<1x40xf32> to vector<3x40xf32>
    %79 = arith.mulf %77, %78 : vector<3x40xf32>
    %80 = arith.addf %79, %3 : vector<3x40xf32>
    %81 = arith.addf %80, %73 : vector<3x40xf32>
    %cst_22 = arith.constant 0.000000e+00 : f32
    %82 = vector.broadcast %cst_22 : f32 to vector<3x40xf32>
    %83 = arith.maximumf %81, %82 : vector<3x40xf32>
    %cst_23 = arith.constant dense<0.000000e+00> : vector<3x41xf32>
    %84 = tpu.matmul %83, %0, %cst_23 {dimension_numbers = #tpu.dot_dimension_numbers<[1], [0], [0], [1], [0, 0, 1, 1], [], []>} : vector<3x40xf32>, vector<40x41xf32>, vector<3x41xf32> -> vector<3x41xf32>
    %85 = vector.broadcast %1 : vector<1x41xf32> to vector<3x41xf32>
    %86 = arith.addf %84, %85 : vector<3x41xf32>
    %87 = vector.extract_strided_slice %86 {offsets = [0, 0], sizes = [3, 40], strides = [1, 1]} : vector<3x41xf32> to vector<3x40xf32>
    %88 = vector.extract_strided_slice %86 {offsets = [0, 40], sizes = [3, 1], strides = [1, 1]} : vector<3x41xf32> to vector<3x1xf32>
    %c0_24 = arith.constant 0 : index
    %c5 = arith.constant 5 : index
    %89 = vector.load %arg2[%c0_24, %c5] : memref<3x8xf32, #tpu.memory_space<vmem>>, vector<3x1xf32>
    tpu.vector_store %arg2[%c0_24, %c5], %88 {strides = array<i32>} : memref<3x8xf32, #tpu.memory_space<vmem>>, vector<3x1xf32>,
    %90 = vector.extract_strided_slice %4 {offsets = [0, 6], sizes = [3, 1], strides = [1, 1]} : vector<3x8xf32> to vector<3x1xf32>
    %91 = vector.broadcast %90 : vector<3x1xf32> to vector<3x40xf32>
    %92 = vector.broadcast %2 : vector<1x40xf32> to vector<3x40xf32>
    %93 = arith.mulf %91, %92 : vector<3x40xf32>
    %94 = arith.addf %93, %3 : vector<3x40xf32>
    %95 = arith.addf %94, %87 : vector<3x40xf32>
    %cst_25 = arith.constant 0.000000e+00 : f32
    %96 = vector.broadcast %cst_25 : f32 to vector<3x40xf32>
    %97 = arith.maximumf %95, %96 : vector<3x40xf32>
    %cst_26 = arith.constant dense<0.000000e+00> : vector<3x41xf32>
    %98 = tpu.matmul %97, %0, %cst_26 {dimension_numbers = #tpu.dot_dimension_numbers<[1], [0], [0], [1], [0, 0, 1, 1], [], []>} : vector<3x40xf32>, vector<40x41xf32>, vector<3x41xf32> -> vector<3x41xf32>
    %99 = vector.broadcast %1 : vector<1x41xf32> to vector<3x41xf32>
    %100 = arith.addf %98, %99 : vector<3x41xf32>
    %101 = vector.extract_strided_slice %100 {offsets = [0, 0], sizes = [3, 40], strides = [1, 1]} : vector<3x41xf32> to vector<3x40xf32>
    %102 = vector.extract_strided_slice %100 {offsets = [0, 40], sizes = [3, 1], strides = [1, 1]} : vector<3x41xf32> to vector<3x1xf32>
    %c0_27 = arith.constant 0 : index
    %c6 = arith.constant 6 : index
    %103 = vector.load %arg2[%c0_27, %c6] : memref<3x8xf32, #tpu.memory_space<vmem>>, vector<3x1xf32>
    tpu.vector_store %arg2[%c0_27, %c6], %102 {strides = array<i32>} : memref<3x8xf32, #tpu.memory_space<vmem>>, vector<3x1xf32>,
    %104 = vector.extract_strided_slice %4 {offsets = [0, 7], sizes = [3, 1], strides = [1, 1]} : vector<3x8xf32> to vector<3x1xf32>
    %105 = vector.broadcast %104 : vector<3x1xf32> to vector<3x40xf32>
    %106 = vector.broadcast %2 : vector<1x40xf32> to vector<3x40xf32>
    %107 = arith.mulf %105, %106 : vector<3x40xf32>
    %108 = arith.addf %107, %3 : vector<3x40xf32>
    %109 = arith.addf %108, %101 : vector<3x40xf32>
    %cst_28 = arith.constant 0.000000e+00 : f32
    %110 = vector.broadcast %cst_28 : f32 to vector<3x40xf32>
    %111 = arith.maximumf %109, %110 : vector<3x40xf32>
    %cst_29 = arith.constant dense<0.000000e+00> : vector<3x41xf32>
    %112 = tpu.matmul %111, %0, %cst_29 {dimension_numbers = #tpu.dot_dimension_numbers<[1], [0], [0], [1], [0, 0, 1, 1], [], []>} : vector<3x40xf32>, vector<40x41xf32>, vector<3x41xf32> -> vector<3x41xf32>
    %113 = vector.broadcast %1 : vector<1x41xf32> to vector<3x41xf32>
    %114 = arith.addf %112, %113 : vector<3x41xf32>
    %115 = vector.extract_strided_slice %114 {offsets = [0, 40], sizes = [3, 1], strides = [1, 1]} : vector<3x41xf32> to vector<3x1xf32>
    %c0_30 = arith.constant 0 : index
    %c7 = arith.constant 7 : index
    %116 = vector.load %arg2[%c0_30, %c7] : memref<3x8xf32, #tpu.memory_space<vmem>>, vector<3x1xf32>
    tpu.vector_store %arg2[%c0_30, %c7], %115 {strides = array<i32>} : memref<3x8xf32, #tpu.memory_space<vmem>>, vector<3x1xf32>,
    return
  }
}

</mosaic_0001>

<llo_original>
// kernel: rnnpb_forward.1
$region0: #{rnnpb_forward.1}
  #allocation0 [shape = 'u32[]', space=smem, size = 0x4, offset = 0x4, fixed_abs, tag = 'smem constant byte address 0x4 - core index']
  #allocation1 [shape = 'u32[144,128]{1,0:T(1,128)}', space=vmem, size = 0x12000, scoped, tag = 'internal scratch']
  %s0 = inlined_call_operand.vmem [shape: f32[3,8], index: 0, kind: input, shape index: {}]
  %s1 = inlined_call_operand.vmem [shape: f32[48,128], index: 1, kind: input, shape index: {}]
  %s2 = inlined_call_operand.hbm [shape: f32[3,8], index: 2, kind: output, shape index: {}]
  %s3 = sld [smem:[#allocation0]]
  $region18: #{rnnpb_forward.1} parent=0
    _
  %s5 = ssub.s32 1, %s3
  %s6 = scalar_select 0, %s5, %s3
  $region1: #{rnnpb_forward.1} parent=0
    #allocation2 [shape = 'u8[2048]{0}', space=vmem, size = 0x800, scoped, tag = 'output window, operand 0, single buffered']
    #allocation3 [shape = 's32[1]{0}', space=sflag, size = 0x4, scoped, tag = 'scoped memory for rnnpb_forward.1']
    %7 = vsyncpa [#allocation3], 0
    // Predicated region
    $region2: #{rnnpb_forward.1} parent=1 // pred_check
      _
    $region3: #{rnnpb_forward.1} parent=1 // pred_check_branch
      %9 = sbr.rel (0) target = $region5
    $region4: #{rnnpb_forward.1} parent=1 // pred_region
      _
    $region5: #{rnnpb_forward.1} parent=1 // pred_fallthru
      _
    // Predicated region
    $region6: #{rnnpb_forward.1} parent=1 // pred_check
      _
    $region7: #{rnnpb_forward.1} parent=1 // pred_check_branch
      %11 = sbr.rel (0) target = $region9
    $region8: #{rnnpb_forward.1} parent=1 // pred_region
      _
    $region9: #{rnnpb_forward.1} parent=1 // pred_fallthru
      _
    %v12 = vld [vmem:[%s1] sm:$0xff]
    %v13 = vld [vmem:[%s1 + $0x8] sm:$0xff]
    %v14 = vld [vmem:[%s1 + $0x10] sm:$0xff]
    %v15 = vld [vmem:[%s1 + $0x18] sm:$0xff]
    %v16 = vld [vmem:[%s1 + $0x20] sm:$0xff]
    %v17 = vld [vmem:[%s1 + $0x28] sm:$0x1]
    %v18 = vld [vmem:[%s1 + $0x29] sm:$0x1]
    %v19 = vld [vmem:[%s1 + $0x2a] sm:$0x7]
    %v20 = vld [vmem:[%s0] sm:$0x7]
    %22 = vset.pattern.permute.xlu0 0
    %23 = vperm.xlu0 %22, %v20
    %v24 = vpop.permute.xlu0 %23
    %v26 = vlaneseq
    %v27 = vshrl.u32 %v26, 7
    %v28 = vsub.s32 0, %v27
    %v29 = vrot.slane %v18, %v28
    %v30 = vmul.f32 %v24, %v29
    %v31 = vadd.f32 %v30, %v19
    %v32 = vadd.f32 %v31, 0.0
    %v33 = vmax.f32 %v32, 0.0
    %v34 = vlaneseq
    %v35 = vshrl.u32 %v34, 7
    %v36 = vsub.s32 0, %v35
    %v37 = vrot.slane %v17, %v36
    %vm38 = vcmask 326656
    %v40 = vsel %vm38, %v33, 0
    %42 = vmatprep.subr.mxu0 0.0
    %43 = vmatpush1.msra.mxu0 %v12
    %44 = vmatprep.subr.mxu0 0.0
    %45 = vmatpush1.msra.mxu0 %v13
    %46 = vmatprep.subr.mxu0 0.0
    %47 = vmatpush1.msra.mxu0 %v14
    %48 = vmatprep.subr.mxu0 0.0
    %49 = vmatpush1.msra.mxu0 %v15
    %50 = vmatprep.subr.mxu0 0.0
    %51 = vmatpush1.msra.mxu0 %v16
    %52 = vmatprep.subr.mxu0 0.0
    %53 = vmatpush1.msra.mxu0 0.0
    %54 = vmatprep.subr.mxu0 0.0
    %55 = vmatpush1.msra.mxu0 0.0
    %56 = vmatprep.subr.mxu0 0.0
    %57 = vmatpush1.msra.mxu0 0.0
    %58 = vmatprep.subr.mxu0 0.0
    %59 = vmatpush1.msra.mxu0 0.0
    %60 = vmatprep.subr.mxu0 0.0
    %61 = vmatpush1.msra.mxu0 0.0
    %62 = vmatprep.subr.mxu0 0.0
    %63 = vmatpush1.msra.mxu0 0.0
    %64 = vmatprep.subr.mxu0 0.0
    %65 = vmatpush1.msra.mxu0 0.0
    %66 = vmatprep.subr.mxu0 0.0
    %67 = vmatpush1.msra.mxu0 0.0
    %68 = vmatprep.subr.mxu0 0.0
    %69 = vmatpush1.msra.mxu0 0.0
    %70 = vmatprep.subr.mxu0 0.0
    %71 = vmatpush1.msra.mxu0 0.0
    %72 = vmatprep.subr.mxu0 0.0
    %73 = vmatpush1.msra.mxu0 0.0
    %74 = vmatprep.subr.mxu0 0.0
    %75 = vmatpush1.msra.mxu0 0.0
    %76 = vmatprep.subr.mxu0 0.0
    %77 = vmatpush1.msra.mxu0 0.0
    %78 = vmatprep.subr.mxu0 0.0
    %79 = vmatpush1.msra.mxu0 0.0
    %80 = vmatprep.subr.mxu0 0.0
    %81 = vmatpush1.msra.mxu0 0.0
    %82 = vmatprep.subr.mxu0 0.0
    %83 = vmatpush1.msra.mxu0 0.0
    %84 = vmatprep.subr.mxu0 0.0
    %85 = vmatpush1.msra.mxu0 0.0
    %86 = vmatprep.subr.mxu0 0.0
    %87 = vmatpush1.msra.mxu0 0.0
    %88 = vmatprep.subr.mxu0 0.0
    %89 = vmatpush1.msra.mxu0 0.0
    %90 = vmatprep.subr.mxu0 0.0
    %91 = vmatpush1.msra.mxu0 0.0
    %92 = vmatprep.subr.mxu0 0.0
    %93 = vmatpush1.msra.mxu0 0.0
    %94 = vmatprep.subr.mxu0 0.0
    %95 = vmatpush1.msra.mxu0 0.0
    %96 = vmatprep.subr.mxu0 0.0
    %97 = vmatpush1.msra.mxu0 0.0
    %98 = vmatprep.subr.mxu0 0.0
    %99 = vmatpush1.msra.mxu0 0.0
    %100 = vmatprep.subr.mxu0 0.0
    %101 = vmatpush1.msra.mxu0 0.0
    %102 = vmatprep.subr.mxu0 0.0
    %103 = vmatpush1.msra.mxu0 0.0
    %104 = vmatprep.subr.mxu0 0.0
    %105 = vmatpush1.msra.mxu0 0.0
    %106 = vmatprep.mubr.f32.mxu0 0.0
    %107 = vmatmul.mubr.f32.gmra.mrb[0].mxu0 %v40
    %v108 = vpop.f32.mrb[0].mxu0
    %v109 = vadd.f32 %v37, %v108
    %v110 = vpop.f32.mrb[0].mxu0
    %111 = vdwg.mxu0
    %113 = vrot.lane.b32.xlu0 %v109, 88
    %v114 = vpop.permute.xlu0 %113
    %vm116 = vcmask 2048
    %117 = vst.msk [vmem:[#allocation2] sm:$0x7] %vm116, %v114
    %118 = vset.pattern.permute.xlu0 1
    %119 = vperm.xlu0 %118, %v20
    %v120 = vpop.permute.xlu0 %119
    %v122 = vmul.f32 %v120, %v29
    %v123 = vadd.f32 %v122, %v19
    %v124 = vadd.f32 %v123, %v109
    %v125 = vmax.f32 %v124, 0.0
    %v127 = vsel %vm38, %v125, 0
    %129 = vmatprep.subr.mxu0 0.0
    %130 = vmatpush1.msra.mxu0 %v12
    %131 = vmatprep.subr.mxu0 0.0
    %132 = vmatpush1.msra.mxu0 %v13
    %133 = vmatprep.subr.mxu0 0.0
    %134 = vmatpush1.msra.mxu0 %v14
    %135 = vmatprep.subr.mxu0 0.0
    %136 = vmatpush1.msra.mxu0 %v15
    %137 = vmatprep.subr.mxu0 0.0
    %138 = vmatpush1.msra.mxu0 %v16
    %139 = vmatprep.subr.mxu0 0.0
    %140 = vmatpush1.msra.mxu0 0.0
    %141 = vmatprep.subr.mxu0 0.0
    %142 = vmatpush1.msra.mxu0 0.0
    %143 = vmatprep.subr.mxu0 0.0
    %144 = vmatpush1.msra.mxu0 0.0
    %145 = vmatprep.subr.mxu0 0.0
    %146 = vmatpush1.msra.mxu0 0.0
    %147 = vmatprep.subr.mxu0 0.0
    %148 = vmatpush1.msra.mxu0 0.0
    %149 = vmatprep.subr.mxu0 0.0
    %150 = vmatpush1.msra.mxu0 0.0
    %151 = vmatprep.subr.mxu0 0.0
    %152 = vmatpush1.msra.mxu0 0.0
    %153 = vmatprep.subr.mxu0 0.0
    %154 = vmatpush1.msra.mxu0 0.0
    %155 = vmatprep.subr.mxu0 0.0
    %156 = vmatpush1.msra.mxu0 0.0
    %157 = vmatprep.subr.mxu0 0.0
    %158 = vmatpush1.msra.mxu0 0.0
    %159 = vmatprep.subr.mxu0 0.0
    %160 = vmatpush1.msra.mxu0 0.0
    %161 = vmatprep.subr.mxu0 0.0
    %162 = vmatpush1.msra.mxu0 0.0
    %163 = vmatprep.subr.mxu0 0.0
    %164 = vmatpush1.msra.mxu0 0.0
    %165 = vmatprep.subr.mxu0 0.0
    %166 = vmatpush1.msra.mxu0 0.0
    %167 = vmatprep.subr.mxu0 0.0
    %168 = vmatpush1.msra.mxu0 0.0
    %169 = vmatprep.subr.mxu0 0.0
    %170 = vmatpush1.msra.mxu0 0.0
    %171 = vmatprep.subr.mxu0 0.0
    %172 = vmatpush1.msra.mxu0 0.0
    %173 = vmatprep.subr.mxu0 0.0
    %174 = vmatpush1.msra.mxu0 0.0
    %175 = vmatprep.subr.mxu0 0.0
    %176 = vmatpush1.msra.mxu0 0.0
    %177 = vmatprep.subr.mxu0 0.0
    %178 = vmatpush1.msra.mxu0 0.0
    %179 = vmatprep.subr.mxu0 0.0
    %180 = vmatpush1.msra.mxu0 0.0
    %181 = vmatprep.subr.mxu0 0.0
    %182 = vmatpush1.msra.mxu0 0.0
    %183 = vmatprep.subr.mxu0 0.0
    %184 = vmatpush1.msra.mxu0 0.0
    %185 = vmatprep.subr.mxu0 0.0
    %186 = vmatpush1.msra.mxu0 0.0
    %187 = vmatprep.subr.mxu0 0.0
    %188 = vmatpush1.msra.mxu0 0.0
    %189 = vmatprep.subr.mxu0 0.0
    %190 = vmatpush1.msra.mxu0 0.0
    %191 = vmatprep.subr.mxu0 0.0
    %192 = vmatpush1.msra.mxu0 0.0
    %193 = vmatprep.mubr.f32.mxu0 0.0
    %194 = vmatmul.mubr.f32.gmra.mrb[0].mxu0 %v127
    %v195 = vpop.f32.mrb[0].mxu0
    %v196 = vadd.f32 %v37, %v195
    %v197 = vpop.f32.mrb[0].mxu0
    %198 = vdwg.mxu0
    %200 = vrot.lane.b32.xlu0 %v196, 89
    %v201 = vpop.permute.xlu0 %200
    %vm203 = vcmask 10248
    %204 = vst.msk [vmem:[#allocation2] sm:$0x7] %vm203, %v201
    %205 = vset.pattern.permute.xlu0 2
    %206 = vperm.xlu0 %205, %v20
    %v207 = vpop.permute.xlu0 %206
    %v209 = vmul.f32 %v207, %v29
    %v210 = vadd.f32 %v209, %v19
    %v211 = vadd.f32 %v210, %v196
    %v212 = vmax.f32 %v211, 0.0
    %v214 = vsel %vm38, %v212, 0
    %216 = vmatprep.subr.mxu0 0.0
    %217 = vmatpush1.msra.mxu0 %v12
    %218 = vmatprep.subr.mxu0 0.0
    %219 = vmatpush1.msra.mxu0 %v13
    %220 = vmatprep.subr.mxu0 0.0
    %221 = vmatpush1.msra.mxu0 %v14
    %222 = vmatprep.subr.mxu0 0.0
    %223 = vmatpush1.msra.mxu0 %v15
    %224 = vmatprep.subr.mxu0 0.0
    %225 = vmatpush1.msra.mxu0 %v16
    %226 = vmatprep.subr.mxu0 0.0
    %227 = vmatpush1.msra.mxu0 0.0
    %228 = vmatprep.subr.mxu0 0.0
    %229 = vmatpush1.msra.mxu0 0.0
    %230 = vmatprep.subr.mxu0 0.0
    %231 = vmatpush1.msra.mxu0 0.0
    %232 = vmatprep.subr.mxu0 0.0
    %233 = vmatpush1.msra.mxu0 0.0
    %234 = vmatprep.subr.mxu0 0.0
    %235 = vmatpush1.msra.mxu0 0.0
    %236 = vmatprep.subr.mxu0 0.0
    %237 = vmatpush1.msra.mxu0 0.0
    %238 = vmatprep.subr.mxu0 0.0
    %239 = vmatpush1.msra.mxu0 0.0
    %240 = vmatprep.subr.mxu0 0.0
    %241 = vmatpush1.msra.mxu0 0.0
    %242 = vmatprep.subr.mxu0 0.0
    %243 = vmatpush1.msra.mxu0 0.0
    %244 = vmatprep.subr.mxu0 0.0
    %245 = vmatpush1.msra.mxu0 0.0
    %246 = vmatprep.subr.mxu0 0.0
    %247 = vmatpush1.msra.mxu0 0.0
    %248 = vmatprep.subr.mxu0 0.0
    %249 = vmatpush1.msra.mxu0 0.0
    %250 = vmatprep.subr.mxu0 0.0
    %251 = vmatpush1.msra.mxu0 0.0
    %252 = vmatprep.subr.mxu0 0.0
    %253 = vmatpush1.msra.mxu0 0.0
    %254 = vmatprep.subr.mxu0 0.0
    %255 = vmatpush1.msra.mxu0 0.0
    %256 = vmatprep.subr.mxu0 0.0
    %257 = vmatpush1.msra.mxu0 0.0
    %258 = vmatprep.subr.mxu0 0.0
    %259 = vmatpush1.msra.mxu0 0.0
    %260 = vmatprep.subr.mxu0 0.0
    %261 = vmatpush1.msra.mxu0 0.0
    %262 = vmatprep.subr.mxu0 0.0
    %263 = vmatpush1.msra.mxu0 0.0
    %264 = vmatprep.subr.mxu0 0.0
    %265 = vmatpush1.msra.mxu0 0.0
    %266 = vmatprep.subr.mxu0 0.0
    %267 = vmatpush1.msra.mxu0 0.0
    %268 = vmatprep.subr.mxu0 0.0
    %269 = vmatpush1.msra.mxu0 0.0
    %270 = vmatprep.subr.mxu0 0.0
    %271 = vmatpush1.msra.mxu0 0.0
    %272 = vmatprep.subr.mxu0 0.0
    %273 = vmatpush1.msra.mxu0 0.0
    %274 = vmatprep.subr.mxu0 0.0
    %275 = vmatpush1.msra.mxu0 0.0
    %276 = vmatprep.subr.mxu0 0.0
    %277 = vmatpush1.msra.mxu0 0.0
    %278 = vmatprep.subr.mxu0 0.0
    %279 = vmatpush1.msra.mxu0 0.0
    %280 = vmatprep.mubr.f32.mxu0 0.0
    %281 = vmatmul.mubr.f32.gmra.mrb[0].mxu0 %v214
    %v282 = vpop.f32.mrb[0].mxu0
    %v283 = vadd.f32 %v37, %v282
    %v284 = vpop.f32.mrb[0].mxu0
    %285 = vdwg.mxu0
    %287 = vrot.lane.b32.xlu0 %v283, 90
    %v288 = vpop.permute.xlu0 %287
    %vm290 = vcmask 18448
    %291 = vst.msk [vmem:[#allocation2] sm:$0x7] %vm290, %v288
    %292 = vset.pattern.permute.xlu0 3
    %293 = vperm.xlu0 %292, %v20
    %v294 = vpop.permute.xlu0 %293
    %v296 = vmul.f32 %v294, %v29
    %v297 = vadd.f32 %v296, %v19
    %v298 = vadd.f32 %v297, %v283
    %v299 = vmax.f32 %v298, 0.0
    %v301 = vsel %vm38, %v299, 0
    %303 = vmatprep.subr.mxu0 0.0
    %304 = vmatpush1.msra.mxu0 %v12
    %305 = vmatprep.subr.mxu0 0.0
    %306 = vmatpush1.msra.mxu0 %v13
    %307 = vmatprep.subr.mxu0 0.0
    %308 = vmatpush1.msra.mxu0 %v14
    %309 = vmatprep.subr.mxu0 0.0
    %310 = vmatpush1.msra.mxu0 %v15
    %311 = vmatprep.subr.mxu0 0.0
    %312 = vmatpush1.msra.mxu0 %v16
    %313 = vmatprep.subr.mxu0 0.0
    %314 = vmatpush1.msra.mxu0 0.0
    %315 = vmatprep.subr.mxu0 0.0
    %316 = vmatpush1.msra.mxu0 0.0
    %317 = vmatprep.subr.mxu0 0.0
    %318 = vmatpush1.msra.mxu0 0.0
    %319 = vmatprep.subr.mxu0 0.0
    %320 = vmatpush1.msra.mxu0 0.0
    %321 = vmatprep.subr.mxu0 0.0
    %322 = vmatpush1.msra.mxu0 0.0
    %323 = vmatprep.subr.mxu0 0.0
    %324 = vmatpush1.msra.mxu0 0.0
    %325 = vmatprep.subr.mxu0 0.0
    %326 = vmatpush1.msra.mxu0 0.0
    %327 = vmatprep.subr.mxu0 0.0
    %328 = vmatpush1.msra.mxu0 0.0
    %329 = vmatprep.subr.mxu0 0.0
    %330 = vmatpush1.msra.mxu0 0.0
    %331 = vmatprep.subr.mxu0 0.0
    %332 = vmatpush1.msra.mxu0 0.0
    %333 = vmatprep.subr.mxu0 0.0
    %334 = vmatpush1.msra.mxu0 0.0
    %335 = vmatprep.subr.mxu0 0.0
    %336 = vmatpush1.msra.mxu0 0.0
    %337 = vmatprep.subr.mxu0 0.0
    %338 = vmatpush1.msra.mxu0 0.0
    %339 = vmatprep.subr.mxu0 0.0
    %340 = vmatpush1.msra.mxu0 0.0
    %341 = vmatprep.subr.mxu0 0.0
    %342 = vmatpush1.msra.mxu0 0.0
    %343 = vmatprep.subr.mxu0 0.0
    %344 = vmatpush1.msra.mxu0 0.0
    %345 = vmatprep.subr.mxu0 0.0
    %346 = vmatpush1.msra.mxu0 0.0
    %347 = vmatprep.subr.mxu0 0.0
    %348 = vmatpush1.msra.mxu0 0.0
    %349 = vmatprep.subr.mxu0 0.0
    %350 = vmatpush1.msra.mxu0 0.0
    %351 = vmatprep.subr.mxu0 0.0
    %352 = vmatpush1.msra.mxu0 0.0
    %353 = vmatprep.subr.mxu0 0.0
    %354 = vmatpush1.msra.mxu0 0.0
    %355 = vmatprep.subr.mxu0 0.0
    %356 = vmatpush1.msra.mxu0 0.0
    %357 = vmatprep.subr.mxu0 0.0
    %358 = vmatpush1.msra.mxu0 0.0
    %359 = vmatprep.subr.mxu0 0.0
    %360 = vmatpush1.msra.mxu0 0.0
    %361 = vmatprep.subr.mxu0 0.0
    %362 = vmatpush1.msra.mxu0 0.0
    %363 = vmatprep.subr.mxu0 0.0
    %364 = vmatpush1.msra.mxu0 0.0
    %365 = vmatprep.subr.mxu0 0.0
    %366 = vmatpush1.msra.mxu0 0.0
    %367 = vmatprep.mubr.f32.mxu0 0.0
    %368 = vmatmul.mubr.f32.gmra.mrb[0].mxu0 %v301
    %v369 = vpop.f32.mrb[0].mxu0
    %v370 = vadd.f32 %v37, %v369
    %v371 = vpop.f32.mrb[0].mxu0
    %372 = vdwg.mxu0
    %374 = vrot.lane.b32.xlu0 %v370, 91
    %v375 = vpop.permute.xlu0 %374
    %vm377 = vcmask 26648
    %378 = vst.msk [vmem:[#allocation2] sm:$0x7] %vm377, %v375
    %379 = vset.pattern.permute.xlu0 4
    %380 = vperm.xlu0 %379, %v20
    %v381 = vpop.permute.xlu0 %380
    %v383 = vmul.f32 %v381, %v29
    %v384 = vadd.f32 %v383, %v19
    %v385 = vadd.f32 %v384, %v370
    %v386 = vmax.f32 %v385, 0.0
    %v388 = vsel %vm38, %v386, 0
    %390 = vmatprep.subr.mxu0 0.0
    %391 = vmatpush1.msra.mxu0 %v12
    %392 = vmatprep.subr.mxu0 0.0
    %393 = vmatpush1.msra.mxu0 %v13
    %394 = vmatprep.subr.mxu0 0.0
    %395 = vmatpush1.msra.mxu0 %v14
    %396 = vmatprep.subr.mxu0 0.0
    %397 = vmatpush1.msra.mxu0 %v15
    %398 = vmatprep.subr.mxu0 0.0
    %399 = vmatpush1.msra.mxu0 %v16
    %400 = vmatprep.subr.mxu0 0.0
    %401 = vmatpush1.msra.mxu0 0.0
    %402 = vmatprep.subr.mxu0 0.0
    %403 = vmatpush1.msra.mxu0 0.0
    %404 = vmatprep.subr.mxu0 0.0
    %405 = vmatpush1.msra.mxu0 0.0
    %406 = vmatprep.subr.mxu0 0.0
    %407 = vmatpush1.msra.mxu0 0.0
    %408 = vmatprep.subr.mxu0 0.0
    %409 = vmatpush1.msra.mxu0 0.0
    %410 = vmatprep.subr.mxu0 0.0
    %411 = vmatpush1.msra.mxu0 0.0
    %412 = vmatprep.subr.mxu0 0.0
    %413 = vmatpush1.msra.mxu0 0.0
    %414 = vmatprep.subr.mxu0 0.0
    %415 = vmatpush1.msra.mxu0 0.0
    %416 = vmatprep.subr.mxu0 0.0
    %417 = vmatpush1.msra.mxu0 0.0
    %418 = vmatprep.subr.mxu0 0.0
    %419 = vmatpush1.msra.mxu0 0.0
    %420 = vmatprep.subr.mxu0 0.0
    %421 = vmatpush1.msra.mxu0 0.0
    %422 = vmatprep.subr.mxu0 0.0
    %423 = vmatpush1.msra.mxu0 0.0
    %424 = vmatprep.subr.mxu0 0.0
    %425 = vmatpush1.msra.mxu0 0.0
    %426 = vmatprep.subr.mxu0 0.0
    %427 = vmatpush1.msra.mxu0 0.0
    %428 = vmatprep.subr.mxu0 0.0
    %429 = vmatpush1.msra.mxu0 0.0
    %430 = vmatprep.subr.mxu0 0.0
    %431 = vmatpush1.msra.mxu0 0.0
    %432 = vmatprep.subr.mxu0 0.0
    %433 = vmatpush1.msra.mxu0 0.0
    %434 = vmatprep.subr.mxu0 0.0
    %435 = vmatpush1.msra.mxu0 0.0
    %436 = vmatprep.subr.mxu0 0.0
    %437 = vmatpush1.msra.mxu0 0.0
    %438 = vmatprep.subr.mxu0 0.0
    %439 = vmatpush1.msra.mxu0 0.0
    %440 = vmatprep.subr.mxu0 0.0
    %441 = vmatpush1.msra.mxu0 0.0
    %442 = vmatprep.subr.mxu0 0.0
    %443 = vmatpush1.msra.mxu0 0.0
    %444 = vmatprep.subr.mxu0 0.0
    %445 = vmatpush1.msra.mxu0 0.0
    %446 = vmatprep.subr.mxu0 0.0
    %447 = vmatpush1.msra.mxu0 0.0
    %448 = vmatprep.subr.mxu0 0.0
    %449 = vmatpush1.msra.mxu0 0.0
    %450 = vmatprep.subr.mxu0 0.0
    %451 = vmatpush1.msra.mxu0 0.0
    %452 = vmatprep.subr.mxu0 0.0
    %453 = vmatpush1.msra.mxu0 0.0
    %454 = vmatprep.mubr.f32.mxu0 0.0
    %455 = vmatmul.mubr.f32.gmra.mrb[0].mxu0 %v388
    %v456 = vpop.f32.mrb[0].mxu0
    %v457 = vadd.f32 %v37, %v456
    %v458 = vpop.f32.mrb[0].mxu0
    %459 = vdwg.mxu0
    %461 = vrot.lane.b32.xlu0 %v457, 92
    %v462 = vpop.permute.xlu0 %461
    %vm464 = vcmask 34848
    %465 = vst.msk [vmem:[#allocation2] sm:$0x7] %vm464, %v462
    %466 = vset.pattern.permute.xlu0 5
    %467 = vperm.xlu0 %466, %v20
    %v468 = vpop.permute.xlu0 %467
    %v470 = vmul.f32 %v468, %v29
    %v471 = vadd.f32 %v470, %v19
    %v472 = vadd.f32 %v471, %v457
    %v473 = vmax.f32 %v472, 0.0
    %v475 = vsel %vm38, %v473, 0
    %477 = vmatprep.subr.mxu0 0.0
    %478 = vmatpush1.msra.mxu0 %v12
    %479 = vmatprep.subr.mxu0 0.0
    %480 = vmatpush1.msra.mxu0 %v13
    %481 = vmatprep.subr.mxu0 0.0
    %482 = vmatpush1.msra.mxu0 %v14
    %483 = vmatprep.subr.mxu0 0.0
    %484 = vmatpush1.msra.mxu0 %v15
    %485 = vmatprep.subr.mxu0 0.0
    %486 = vmatpush1.msra.mxu0 %v16
    %487 = vmatprep.subr.mxu0 0.0
    %488 = vmatpush1.msra.mxu0 0.0
    %489 = vmatprep.subr.mxu0 0.0
    %490 = vmatpush1.msra.mxu0 0.0
    %491 = vmatprep.subr.mxu0 0.0
    %492 = vmatpush1.msra.mxu0 0.0
    %493 = vmatprep.subr.mxu0 0.0
    %494 = vmatpush1.msra.mxu0 0.0
    %495 = vmatprep.subr.mxu0 0.0
    %496 = vmatpush1.msra.mxu0 0.0
    %497 = vmatprep.subr.mxu0 0.0
    %498 = vmatpush1.msra.mxu0 0.0
    %499 = vmatprep.subr.mxu0 0.0
    %500 = vmatpush1.msra.mxu0 0.0
    %501 = vmatprep.subr.mxu0 0.0
    %502 = vmatpush1.msra.mxu0 0.0
    %503 = vmatprep.subr.mxu0 0.0
    %504 = vmatpush1.msra.mxu0 0.0
    %505 = vmatprep.subr.mxu0 0.0
    %506 = vmatpush1.msra.mxu0 0.0
    %507 = vmatprep.subr.mxu0 0.0
    %508 = vmatpush1.msra.mxu0 0.0
    %509 = vmatprep.subr.mxu0 0.0
    %510 = vmatpush1.msra.mxu0 0.0
    %511 = vmatprep.subr.mxu0 0.0
    %512 = vmatpush1.msra.mxu0 0.0
    %513 = vmatprep.subr.mxu0 0.0
    %514 = vmatpush1.msra.mxu0 0.0
    %515 = vmatprep.subr.mxu0 0.0
    %516 = vmatpush1.msra.mxu0 0.0
    %517 = vmatprep.subr.mxu0 0.0
    %518 = vmatpush1.msra.mxu0 0.0
    %519 = vmatprep.subr.mxu0 0.0
    %520 = vmatpush1.msra.mxu0 0.0
    %521 = vmatprep.subr.mxu0 0.0
    %522 = vmatpush1.msra.mxu0 0.0
    %523 = vmatprep.subr.mxu0 0.0
    %524 = vmatpush1.msra.mxu0 0.0
    %525 = vmatprep.subr.mxu0 0.0
    %526 = vmatpush1.msra.mxu0 0.0
    %527 = vmatprep.subr.mxu0 0.0
    %528 = vmatpush1.msra.mxu0 0.0
    %529 = vmatprep.subr.mxu0 0.0
    %530 = vmatpush1.msra.mxu0 0.0
    %531 = vmatprep.subr.mxu0 0.0
    %532 = vmatpush1.msra.mxu0 0.0
    %533 = vmatprep.subr.mxu0 0.0
    %534 = vmatpush1.msra.mxu0 0.0
    %535 = vmatprep.subr.mxu0 0.0
    %536 = vmatpush1.msra.mxu0 0.0
    %537 = vmatprep.subr.mxu0 0.0
    %538 = vmatpush1.msra.mxu0 0.0
    %539 = vmatprep.subr.mxu0 0.0
    %540 = vmatpush1.msra.mxu0 0.0
    %541 = vmatprep.mubr.f32.mxu0 0.0
    %542 = vmatmul.mubr.f32.gmra.mrb[0].mxu0 %v475
    %v543 = vpop.f32.mrb[0].mxu0
    %v544 = vadd.f32 %v37, %v543
    %v545 = vpop.f32.mrb[0].mxu0
    %546 = vdwg.mxu0
    %548 = vrot.lane.b32.xlu0 %v544, 93
    %v549 = vpop.permute.xlu0 %548
    %vm551 = vcmask 43048
    %552 = vst.msk [vmem:[#allocation2] sm:$0x7] %vm551, %v549
    %553 = vset.pattern.permute.xlu0 6
    %554 = vperm.xlu0 %553, %v20
    %v555 = vpop.permute.xlu0 %554
    %v557 = vmul.f32 %v555, %v29
    %v558 = vadd.f32 %v557, %v19
    %v559 = vadd.f32 %v558, %v544
    %v560 = vmax.f32 %v559, 0.0
    %v562 = vsel %vm38, %v560, 0
    %564 = vmatprep.subr.mxu0 0.0
    %565 = vmatpush1.msra.mxu0 %v12
    %566 = vmatprep.subr.mxu0 0.0
    %567 = vmatpush1.msra.mxu0 %v13
    %568 = vmatprep.subr.mxu0 0.0
    %569 = vmatpush1.msra.mxu0 %v14
    %570 = vmatprep.subr.mxu0 0.0
    %571 = vmatpush1.msra.mxu0 %v15
    %572 = vmatprep.subr.mxu0 0.0
    %573 = vmatpush1.msra.mxu0 %v16
    %574 = vmatprep.subr.mxu0 0.0
    %575 = vmatpush1.msra.mxu0 0.0
    %576 = vmatprep.subr.mxu0 0.0
    %577 = vmatpush1.msra.mxu0 0.0
    %578 = vmatprep.subr.mxu0 0.0
    %579 = vmatpush1.msra.mxu0 0.0
    %580 = vmatprep.subr.mxu0 0.0
    %581 = vmatpush1.msra.mxu0 0.0
    %582 = vmatprep.subr.mxu0 0.0
    %583 = vmatpush1.msra.mxu0 0.0
    %584 = vmatprep.subr.mxu0 0.0
    %585 = vmatpush1.msra.mxu0 0.0
    %586 = vmatprep.subr.mxu0 0.0
    %587 = vmatpush1.msra.mxu0 0.0
    %588 = vmatprep.subr.mxu0 0.0
    %589 = vmatpush1.msra.mxu0 0.0
    %590 = vmatprep.subr.mxu0 0.0
    %591 = vmatpush1.msra.mxu0 0.0
    %592 = vmatprep.subr.mxu0 0.0
    %593 = vmatpush1.msra.mxu0 0.0
    %594 = vmatprep.subr.mxu0 0.0
    %595 = vmatpush1.msra.mxu0 0.0
    %596 = vmatprep.subr.mxu0 0.0
    %597 = vmatpush1.msra.mxu0 0.0
    %598 = vmatprep.subr.mxu0 0.0
    %599 = vmatpush1.msra.mxu0 0.0
    %600 = vmatprep.subr.mxu0 0.0
    %601 = vmatpush1.msra.mxu0 0.0
    %602 = vmatprep.subr.mxu0 0.0
    %603 = vmatpush1.msra.mxu0 0.0
    %604 = vmatprep.subr.mxu0 0.0
    %605 = vmatpush1.msra.mxu0 0.0
    %606 = vmatprep.subr.mxu0 0.0
    %607 = vmatpush1.msra.mxu0 0.0
    %608 = vmatprep.subr.mxu0 0.0
    %609 = vmatpush1.msra.mxu0 0.0
    %610 = vmatprep.subr.mxu0 0.0
    %611 = vmatpush1.msra.mxu0 0.0
    %612 = vmatprep.subr.mxu0 0.0
    %613 = vmatpush1.msra.mxu0 0.0
    %614 = vmatprep.subr.mxu0 0.0
    %615 = vmatpush1.msra.mxu0 0.0
    %616 = vmatprep.subr.mxu0 0.0
    %617 = vmatpush1.msra.mxu0 0.0
    %618 = vmatprep.subr.mxu0 0.0
    %619 = vmatpush1.msra.mxu0 0.0
    %620 = vmatprep.subr.mxu0 0.0
    %621 = vmatpush1.msra.mxu0 0.0
    %622 = vmatprep.subr.mxu0 0.0
    %623 = vmatpush1.msra.mxu0 0.0
    %624 = vmatprep.subr.mxu0 0.0
    %625 = vmatpush1.msra.mxu0 0.0
    %626 = vmatprep.subr.mxu0 0.0
    %627 = vmatpush1.msra.mxu0 0.0
    %628 = vmatprep.mubr.f32.mxu0 0.0
    %629 = vmatmul.mubr.f32.gmra.mrb[0].mxu0 %v562
    %v630 = vpop.f32.mrb[0].mxu0
    %v631 = vadd.f32 %v37, %v630
    %v632 = vpop.f32.mrb[0].mxu0
    %633 = vdwg.mxu0
    %635 = vrot.lane.b32.xlu0 %v631, 94
    %v636 = vpop.permute.xlu0 %635
    %vm638 = vcmask 51248
    %639 = vst.msk [vmem:[#allocation2] sm:$0x7] %vm638, %v636
    %640 = vset.pattern.permute.xlu0 7
    %641 = vperm.xlu0 %640, %v20
    %v642 = vpop.permute.xlu0 %641
    %v644 = vmul.f32 %v642, %v29
    %v645 = vadd.f32 %v644, %v19
    %v646 = vadd.f32 %v645, %v631
    %v647 = vmax.f32 %v646, 0.0
    %v649 = vsel %vm38, %v647, 0
    %651 = vmatprep.subr.mxu0 0.0
    %652 = vmatpush1.msra.mxu0 %v12
    %653 = vmatprep.subr.mxu0 0.0
    %654 = vmatpush1.msra.mxu0 %v13
    %655 = vmatprep.subr.mxu0 0.0
    %656 = vmatpush1.msra.mxu0 %v14
    %657 = vmatprep.subr.mxu0 0.0
    %658 = vmatpush1.msra.mxu0 %v15
    %659 = vmatprep.subr.mxu0 0.0
    %660 = vmatpush1.msra.mxu0 %v16
    %661 = vmatprep.subr.mxu0 0.0
    %662 = vmatpush1.msra.mxu0 0.0
    %663 = vmatprep.subr.mxu0 0.0
    %664 = vmatpush1.msra.mxu0 0.0
    %665 = vmatprep.subr.mxu0 0.0
    %666 = vmatpush1.msra.mxu0 0.0
    %667 = vmatprep.subr.mxu0 0.0
    %668 = vmatpush1.msra.mxu0 0.0
    %669 = vmatprep.subr.mxu0 0.0
    %670 = vmatpush1.msra.mxu0 0.0
    %671 = vmatprep.subr.mxu0 0.0
    %672 = vmatpush1.msra.mxu0 0.0
    %673 = vmatprep.subr.mxu0 0.0
    %674 = vmatpush1.msra.mxu0 0.0
    %675 = vmatprep.subr.mxu0 0.0
    %676 = vmatpush1.msra.mxu0 0.0
    %677 = vmatprep.subr.mxu0 0.0
    %678 = vmatpush1.msra.mxu0 0.0
    %679 = vmatprep.subr.mxu0 0.0
    %680 = vmatpush1.msra.mxu0 0.0
    %681 = vmatprep.subr.mxu0 0.0
    %682 = vmatpush1.msra.mxu0 0.0
    %683 = vmatprep.subr.mxu0 0.0
    %684 = vmatpush1.msra.mxu0 0.0
    %685 = vmatprep.subr.mxu0 0.0
    %686 = vmatpush1.msra.mxu0 0.0
    %687 = vmatprep.subr.mxu0 0.0
    %688 = vmatpush1.msra.mxu0 0.0
    %689 = vmatprep.subr.mxu0 0.0
    %690 = vmatpush1.msra.mxu0 0.0
    %691 = vmatprep.subr.mxu0 0.0
    %692 = vmatpush1.msra.mxu0 0.0
    %693 = vmatprep.subr.mxu0 0.0
    %694 = vmatpush1.msra.mxu0 0.0
    %695 = vmatprep.subr.mxu0 0.0
    %696 = vmatpush1.msra.mxu0 0.0
    %697 = vmatprep.subr.mxu0 0.0
    %698 = vmatpush1.msra.mxu0 0.0
    %699 = vmatprep.subr.mxu0 0.0
    %700 = vmatpush1.msra.mxu0 0.0
    %701 = vmatprep.subr.mxu0 0.0
    %702 = vmatpush1.msra.mxu0 0.0
    %703 = vmatprep.subr.mxu0 0.0
    %704 = vmatpush1.msra.mxu0 0.0
    %705 = vmatprep.subr.mxu0 0.0
    %706 = vmatpush1.msra.mxu0 0.0
    %707 = vmatprep.subr.mxu0 0.0
    %708 = vmatpush1.msra.mxu0 0.0
    %709 = vmatprep.subr.mxu0 0.0
    %710 = vmatpush1.msra.mxu0 0.0
    %711 = vmatprep.subr.mxu0 0.0
    %712 = vmatpush1.msra.mxu0 0.0
    %713 = vmatprep.subr.mxu0 0.0
    %714 = vmatpush1.msra.mxu0 0.0
    %715 = vmatprep.mubr.f32.mxu0 0.0
    %716 = vmatmul.mubr.f32.gmra.mrb[0].mxu0 %v649
    %v717 = vpop.f32.mrb[0].mxu0
    %v718 = vadd.f32 %v37, %v717
    %v719 = vpop.f32.mrb[0].mxu0
    %720 = vdwg.mxu0
    %722 = vrot.lane.b32.xlu0 %v718, 95
    %v723 = vpop.permute.xlu0 %722
    %vm725 = vcmask 59448
    %726 = vst.msk [vmem:[#allocation2] sm:$0x7] %vm725, %v723
    // Predicated region
    $region10: #{rnnpb_forward.1} parent=1 // pred_check
      _
    $region11: #{rnnpb_forward.1} parent=1 // pred_check_branch
      %728 = sbr.rel (0) target = $region13
    $region12: #{rnnpb_forward.1} parent=1 // pred_region
      %s730 = ssub.s32 64, 64
      %731 = vsyncadd [#allocation3], %s730
      %s733 = sshll.u32 [#allocation2], 4
      %s734 = int_to_ptr.vmem [resolvable:$true] %s733
      %736 = dma.vmem_to_hbm [thread:$0]  %s734, 64, %s2, [#allocation3]
    $region13: #{rnnpb_forward.1} parent=1 // pred_fallthru
      _
    // Predicated region
    $region14: #{rnnpb_forward.1} parent=1 // pred_check
      _
    $region15: #{rnnpb_forward.1} parent=1 // pred_check_branch
      %738 = sbr.rel (0) target = $region17
    $region16: #{rnnpb_forward.1} parent=1 // pred_region
      %739 = dma.done [#allocation3], 64
    $region17: #{rnnpb_forward.1} parent=1 // pred_fallthru
      _
    %740 = vsyncpa [#allocation3], 1

</llo_original>
